<compile_context>
chip_gen: v7x
topology: tpu7x:2x2x1
jax: 0.10.0
libtpu: 0.0.40
codegen_flags: <defaults>
</compile_context>

<pallas_src>
import functools

import jax
import jax.numpy as jnp
from jax import lax
from jax.experimental import pallas as pl
from jax.experimental.pallas import tpu as pltpu


def _round_up(x: int, m: int) -> int:
    return (x + m - 1) // m * m


def gated_conv1d_kernel(xw_ref, w_ref, b_ref, o_ref):
    """One (batch, L-tile) window.

    xw_ref : (L_TILE + K - 1, Cin)   input window (halo included), native dtype
    w_ref  : (K, Cin, 2*Cout_p)      fused [gate | transform] tap weights
    b_ref  : (1, 2*Cout_p)           fused bias
    o_ref  : (L_TILE, Cout_p)        gated output tile
    """
    l_tile, cout_p = o_ref.shape
    k_taps = w_ref.shape[0]

    acc = jnp.zeros((l_tile, 2 * cout_p), jnp.float32)
    # K is small & static -> unrolled; each tap is one MXU matmul whose LHS is
    # sliced directly from the VMEM ref (no materialized shifted copies).
    for k in range(k_taps):
        xs = xw_ref[k:k + l_tile, :]                       # (L_TILE, Cin)
        acc = acc + jnp.dot(xs, w_ref[k], preferred_element_type=jnp.float32)
    acc = acc + b_ref[...].astype(jnp.float32)

    gate = jax.nn.sigmoid(acc[:, :cout_p])                 # lane-aligned split
    transform = acc[:, cout_p:]
    o_ref[...] = (transform * gate).astype(o_ref.dtype)


@functools.partial(jax.jit, static_argnames=("l_tile",))
def gated_conv1d(x_ncl, w_gate, b_gate, w_trans, b_trans, *, l_tile=None):
    """x_ncl: (N, Cin, L) [PyTorch layout]; w_*: (Cout, Cin, K); b_*: (Cout,).

    Returns (N, Cout, L), matching torch GatedConv1D.forward (groups=1, 'same').
    """
    N, Cin, L = x_ncl.shape
    Cout, Cin_w, K = w_gate.shape
    assert Cin_w == Cin and w_trans.shape == (Cout, Cin, K)
    assert b_gate.shape == (Cout,) and b_trans.shape == (Cout,)
    assert K % 2 == 1, "odd kernel_size assumed for 'same' padding"
    pad = (K - 1) // 2

    # ---- tiling choices -------------------------------------------------
    if l_tile is None:
        l_tile = 512                                   # ~85% of HBM roofline tile size
    l_tile = max(8, _round_up(min(l_tile, _round_up(L, 8)), 8))
    n_l = pl.cdiv(L, l_tile)
    l_pad = n_l * l_tile
    lw = l_tile + K - 1                                # window length incl. halo
    cout_p = _round_up(Cout, 128)                      # lane-dense output width

    # ---- glue (layout plumbing, runs as fused XLA ops) ------------------
    x_nlc = jnp.transpose(x_ncl, (0, 2, 1))                             # (N, L, Cin)
    x_full = jnp.pad(x_nlc, ((0, 0), (pad, pad + (l_pad - L)), (0, 0)))  # (N, l_pad+K-1, Cin)
    # Overlapping windows: window j covers rows [j*l_tile, j*l_tile + lw).
    windows = [x_full[:, j * l_tile:j * l_tile + lw, :] for j in range(n_l)]
    x_win = jnp.stack(windows, axis=1).reshape(N * n_l, lw, Cin)        # (T, lw, Cin)

    def prep_w(w):                                     # (Cout, Cin, K) -> (K, Cin, cout_p)
        w = jnp.transpose(w, (2, 1, 0))
        return jnp.pad(w, ((0, 0), (0, 0), (0, cout_p - Cout)))

    w_both = jnp.concatenate([prep_w(w_gate), prep_w(w_trans)], axis=-1)  # (K, Cin, 2*cout_p)
    b_both = jnp.concatenate(
        [jnp.pad(b_gate, (0, cout_p - Cout)), jnp.pad(b_trans, (0, cout_p - Cout))]
    )[None, :]                                                           # (1, 2*cout_p)

    T = N * n_l
    out = pl.pallas_call(
        gated_conv1d_kernel,
        out_shape=jax.ShapeDtypeStruct((T, l_tile, cout_p), x_ncl.dtype),
        grid=(T,),
        in_specs=[
            pl.BlockSpec((None, lw, Cin), lambda t: (t, 0, 0)),          # x window
            pl.BlockSpec((K, Cin, 2 * cout_p), lambda t: (0, 0, 0)),     # fused weights
            pl.BlockSpec((1, 2 * cout_p), lambda t: (0, 0)),             # fused bias
        ],
        out_specs=pl.BlockSpec((None, l_tile, cout_p), lambda t: (t, 0, 0)),
        compiler_params=pltpu.CompilerParams(
            dimension_semantics=("parallel",),
            vmem_limit_bytes=64 * 1024 * 1024,
        ),
    )(x_win, w_both, b_both)

    out = out.reshape(N, l_pad, cout_p)[:, :L, :Cout]                    # drop L/Cout padding
    return jnp.transpose(out, (0, 2, 1))                                 # back to (N, Cout, L)


def _reference(x_ncl, w_gate, b_gate, w_trans, b_trans):
    """Pure-JAX reference mirroring torch: sigmoid(conv_gate(x)) * conv_transform(x)."""
    dn = ("NCH", "OIH", "NCH")  # 1-D conv: N=batch, C=channels, H=length
    g = lax.conv_general_dilated(x_ncl, w_gate, (1,), "SAME", dimension_numbers=dn)
    t = lax.conv_general_dilated(x_ncl, w_trans, (1,), "SAME", dimension_numbers=dn)
    g = g + b_gate[None, :, None]
    t = t + b_trans[None, :, None]
    return t * jax.nn.sigmoid(g)


if __name__ == "__main__":
    key = jax.random.PRNGKey(0)

    # --- test 1: small shapes consistent with the module (N, Cin, L) ---
    N, Cin, Cout, L, K = 2, 4, 8, 16, 3
    kx, kwg, kbg, kwt, kbt, key = jax.random.split(key, 6)
    x = jax.random.normal(kx, (N, Cin, L), jnp.float32)
    w_gate = 0.1 * jax.random.normal(kwg, (Cout, Cin, K), jnp.float32)
    b_gate = 0.1 * jax.random.normal(kbg, (Cout,), jnp.float32)
    w_trans = 0.1 * jax.random.normal(kwt, (Cout, Cin, K), jnp.float32)
    b_trans = 0.1 * jax.random.normal(kbt, (Cout,), jnp.float32)

    out = jax.block_until_ready(gated_conv1d(x, w_gate, b_gate, w_trans, b_trans))
    ref = _reference(x, w_gate, b_gate, w_trans, b_trans)
    assert out.shape == (N, Cout, L), out.shape
    assert jnp.allclose(out, ref, atol=1e-4, rtol=1e-4), "mismatch vs reference (test 1)"

    # --- test 2: exercises multi-window L tiling, L padding and Cout padding ---
    N2, Cin2, Cout2, L2, K2 = 2, 16, 16, 50, 5
    kx2, kwg2, kbg2, kwt2, kbt2, key = jax.random.split(key, 6)
    x2 = jax.random.normal(kx2, (N2, Cin2, L2), jnp.float32)
    wg2 = 0.1 * jax.random.normal(kwg2, (Cout2, Cin2, K2), jnp.float32)
    bg2 = 0.1 * jax.random.normal(kbg2, (Cout2,), jnp.float32)
    wt2 = 0.1 * jax.random.normal(kwt2, (Cout2, Cin2, K2), jnp.float32)
    bt2 = 0.1 * jax.random.normal(kbt2, (Cout2,), jnp.float32)

    out2 = jax.block_until_ready(gated_conv1d(x2, wg2, bg2, wt2, bt2, l_tile=16))
    ref2 = _reference(x2, wg2, bg2, wt2, bt2)
    assert out2.shape == (N2, Cout2, L2), out2.shape
    assert jnp.allclose(out2, ref2, atol=1e-4, rtol=1e-4), "mismatch vs reference (test 2)"

    print("KERNEL_OK")
</pallas_src>

<mosaic_0001>
module attributes {stable_mosaic.version = 11 : i64} {
  func.func @gated_conv1d_kernel(%arg0: i32, %arg1: memref<1x18x4xf32, #tpu.memory_space<vmem>>, %arg2: memref<3x4x256xf32, #tpu.memory_space<vmem>>, %arg3: memref<1x256xf32, #tpu.memory_space<vmem>>, %arg4: memref<1x16x128xf32, #tpu.memory_space<vmem>>) attributes {dimension_semantics = [#tpu.dimension_semantics<parallel>], iteration_bounds = array<i64: 2>, scalar_prefetch = 0 : i64, scratch_operands = 0 : i64, tpu.core_type = #tpu.core_type<tc>, window_params = [{transform_indices = @transform_0, window_bounds = array<i64: 1, 18, 4>}, {pipeline_mode = #tpu.pipeline_mode<synchronous>, transform_indices = @transform_1, window_bounds = array<i64: 3, 4, 256>}, {pipeline_mode = #tpu.pipeline_mode<synchronous>, transform_indices = @transform_2, window_bounds = array<i64: 1, 256>}, {transform_indices = @transform_3, window_bounds = array<i64: 1, 16, 128>}]} {
    %cst = arith.constant 0.000000e+00 : f32
    %0 = vector.broadcast %cst : f32 to vector<16x256xf32>
    %c0 = arith.constant 0 : index
    %c0_0 = arith.constant 0 : index
    %c0_1 = arith.constant 0 : index
    %1 = vector.load %arg1[%c0, %c0_0, %c0_1] : memref<1x18x4xf32, #tpu.memory_space<vmem>>, vector<1x16x4xf32>
    %2 = vector.shape_cast %1 : vector<1x16x4xf32> to vector<16x4xf32>
    %c0_2 = arith.constant 0 : index
    %c0_3 = arith.constant 0 : index
    %c0_4 = arith.constant 0 : index
    %3 = vector.load %arg2[%c0_2, %c0_3, %c0_4] : memref<3x4x256xf32, #tpu.memory_space<vmem>>, vector<1x4x256xf32>
    %4 = vector.shape_cast %3 : vector<1x4x256xf32> to vector<4x256xf32>
    %cst_5 = arith.constant dense<0.000000e+00> : vector<16x256xf32>
    %5 = tpu.matmul %2, %4, %cst_5 {dimension_numbers = #tpu.dot_dimension_numbers<[1], [0], [0], [1], [0, 0, 1, 1], [], []>} : vector<16x4xf32>, vector<4x256xf32>, vector<16x256xf32> -> vector<16x256xf32>
    %6 = arith.addf %0, %5 : vector<16x256xf32>
    %c0_6 = arith.constant 0 : index
    %c1 = arith.constant 1 : index
    %c0_7 = arith.constant 0 : index
    %7 = vector.load %arg1[%c0_6, %c1, %c0_7] : memref<1x18x4xf32, #tpu.memory_space<vmem>>, vector<1x16x4xf32>
    %8 = vector.shape_cast %7 : vector<1x16x4xf32> to vector<16x4xf32>
    %c1_8 = arith.constant 1 : index
    %c0_9 = arith.constant 0 : index
    %c0_10 = arith.constant 0 : index
    %9 = vector.load %arg2[%c1_8, %c0_9, %c0_10] : memref<3x4x256xf32, #tpu.memory_space<vmem>>, vector<1x4x256xf32>
    %10 = vector.shape_cast %9 : vector<1x4x256xf32> to vector<4x256xf32>
    %cst_11 = arith.constant dense<0.000000e+00> : vector<16x256xf32>
    %11 = tpu.matmul %8, %10, %cst_11 {dimension_numbers = #tpu.dot_dimension_numbers<[1], [0], [0], [1], [0, 0, 1, 1], [], []>} : vector<16x4xf32>, vector<4x256xf32>, vector<16x256xf32> -> vector<16x256xf32>
    %12 = arith.addf %6, %11 : vector<16x256xf32>
    %c0_12 = arith.constant 0 : index
    %c2 = arith.constant 2 : index
    %c0_13 = arith.constant 0 : index
    %13 = vector.load %arg1[%c0_12, %c2, %c0_13] : memref<1x18x4xf32, #tpu.memory_space<vmem>>, vector<1x16x4xf32>
    %14 = vector.shape_cast %13 : vector<1x16x4xf32> to vector<16x4xf32>
    %c2_14 = arith.constant 2 : index
    %c0_15 = arith.constant 0 : index
    %c0_16 = arith.constant 0 : index
    %15 = vector.load %arg2[%c2_14, %c0_15, %c0_16] : memref<3x4x256xf32, #tpu.memory_space<vmem>>, vector<1x4x256xf32>
    %16 = vector.shape_cast %15 : vector<1x4x256xf32> to vector<4x256xf32>
    %cst_17 = arith.constant dense<0.000000e+00> : vector<16x256xf32>
    %17 = tpu.matmul %14, %16, %cst_17 {dimension_numbers = #tpu.dot_dimension_numbers<[1], [0], [0], [1], [0, 0, 1, 1], [], []>} : vector<16x4xf32>, vector<4x256xf32>, vector<16x256xf32> -> vector<16x256xf32>
    %18 = arith.addf %12, %17 : vector<16x256xf32>
    %c0_18 = arith.constant 0 : index
    %c0_19 = arith.constant 0 : index
    %19 = vector.load %arg3[%c0_18, %c0_19] : memref<1x256xf32, #tpu.memory_space<vmem>>, vector<1x256xf32>
    %20 = vector.broadcast %19 : vector<1x256xf32> to vector<16x256xf32>
    %21 = arith.addf %18, %20 : vector<16x256xf32>
    %22 = vector.extract_strided_slice %21 {offsets = [0, 0], sizes = [16, 128], strides = [1, 1]} : vector<16x256xf32> to vector<16x128xf32>
    %23 = arith.negf %22 : vector<16x128xf32>
    %24 = math.exp %23 : vector<16x128xf32>
    %cst_20 = arith.constant 1.000000e+00 : f32
    %25 = vector.broadcast %cst_20 : f32 to vector<16x128xf32>
    %26 = arith.addf %25, %24 : vector<16x128xf32>
    %27 = arith.divf %25, %26 : vector<16x128xf32>
    %28 = vector.extract_strided_slice %21 {offsets = [0, 128], sizes = [16, 128], strides = [1, 1]} : vector<16x256xf32> to vector<16x128xf32>
    %29 = arith.mulf %28, %27 : vector<16x128xf32>
    %c0_21 = arith.constant 0 : index
    %c0_22 = arith.constant 0 : index
    %c0_23 = arith.constant 0 : index
    %30 = vector.load %arg4[%c0_21, %c0_22, %c0_23] : memref<1x16x128xf32, #tpu.memory_space<vmem>>, vector<1x16x128xf32>
    %31 = vector.shape_cast %30 : vector<1x16x128xf32> to vector<16x128xf32>
    %32 = vector.shape_cast %29 : vector<16x128xf32> to vector<1x16x128xf32>
    tpu.vector_store %arg4[%c0_21, %c0_22, %c0_23], %32 {strides = array<i32>} : memref<1x16x128xf32, #tpu.memory_space<vmem>>, vector<1x16x128xf32>,
    return
  }
  func.func @transform_0(%arg0: i32) -> (i32, i32, i32) {
    %c0_i32 = arith.constant 0 : i32
    %c0_i32_0 = arith.constant 0 : i32
    %c0_i32_1 = arith.constant 0 : i32
    return %arg0, %c0_i32, %c0_i32_0 : i32, i32, i32
  }
  func.func @transform_1(%arg0: i32) -> (i32, i32, i32) {
    %c0_i32 = arith.constant 0 : i32
    %c0_i32_0 = arith.constant 0 : i32
    %c0_i32_1 = arith.constant 0 : i32
    %c0_i32_2 = arith.constant 0 : i32
    return %c0_i32, %c0_i32_0, %c0_i32_1 : i32, i32, i32
  }
  func.func @transform_2(%arg0: i32) -> (i32, i32) {
    %c0_i32 = arith.constant 0 : i32
    %c0_i32_0 = arith.constant 0 : i32
    %c0_i32_1 = arith.constant 0 : i32
    return %c0_i32, %c0_i32_0 : i32, i32
  }
  func.func @transform_3(%arg0: i32) -> (i32, i32, i32) {
    %c0_i32 = arith.constant 0 : i32
    %c0_i32_0 = arith.constant 0 : i32
    %c0_i32_1 = arith.constant 0 : i32
    return %arg0, %c0_i32, %c0_i32_0 : i32, i32, i32
  }
}

</mosaic_0001>

<llo_original>
// kernel: gated_conv1d.1
$region0: #{gated_conv1d.1}
  #allocation0 [shape = 'u32[]', space=smem, size = 0x4, offset = 0x4, fixed_abs, tag = 'smem constant byte address 0x4 - core index']
  #allocation1 [shape = 'u32[144,128]{1,0:T(1,128)}', space=vmem, size = 0x12000, scoped, tag = 'internal scratch']
  %s0 = inlined_call_operand.hbm [shape: f32[2,18,4], index: 0, kind: input, shape index: {}]
  %s1 = inlined_call_operand.hbm [shape: f32[3,4,256], index: 1, kind: input, shape index: {}]
  %s2 = inlined_call_operand.hbm [shape: f32[1,256], index: 2, kind: input, shape index: {}]
  %s3 = inlined_call_operand.hbm [shape: f32[2,16,128], index: 3, kind: output, shape index: {}]
  %s4 = sld [smem:[#allocation0]]
  $region57: #{gated_conv1d.1} parent=0
    _
  %s6 = ssub.s32 1, %s4
  %s7 = scalar_select 0, %s6, %s4
  $region1: #{gated_conv1d.1} parent=0
    #allocation2 [shape = 'u8[24576]{0}', space=vmem, size = 0x6000, scoped, tag = 'input window, operand 0']
    #allocation3 [shape = 's32[2]{0}', space=sflag, size = 0x8, scoped, tag = 'scoped memory for gated_conv1d.1']
    #allocation4 [shape = 's32[2]{0}', space=sflag, size = 0x8, scoped, tag = 'scoped memory for gated_conv1d.1']
    #allocation5 [shape = 'u8[12288]{0}', space=vmem, size = 0x3000, scoped, tag = 'input window, operand 1, single buffered']
    #allocation6 [shape = 's32[1]{0}', space=sflag, size = 0x4, scoped, tag = 'scoped memory for gated_conv1d.1']
    #allocation7 [shape = 'u8[1024]{0}', space=vmem, size = 0x400, scoped, tag = 'input window, operand 2, single buffered']
    #allocation8 [shape = 'u8[16384]{0}', space=vmem, size = 0x4000, scoped, tag = 'output window, operand 0']
    %8 = vsyncpa [#allocation3], 0
    %s9 = scalar_lea.sflag [#allocation3], 1
    %10 = vsyncpa %s9, 0
    %11 = vsyncpa [#allocation6], 0
    %12 = vsyncpa [#allocation4], 0
    %s13 = scalar_lea.sflag [#allocation4], 1
    %14 = vsyncpa %s13, 0
    loop: start=0, step=1, limit=4
    $region2: #{gated_conv1d.1} parent=1 // loop_pre_header
      _
    $region3: #{gated_conv1d.1} parent=1 // loop_header
      %s16 = sphi 0, %s20
      %p17 = scmp.ge.s32.totalorder %s16, 4
      %s26 = sphi 0, %s28
      %s29 = sphi 0, %s26
      %s30 = sphi 0, %s29
      %s46 = sphi 0, %s30
      %s50 = sphi 0, %s50
      %s52 = sphi 0, %s50
      %s53 = sphi 0, %s52
      %s67 = sphi 0, %s53
      %s71 = sphi 0, %s71
      %s73 = sphi 0, %s71
      %s74 = sphi 0, %s73
      %s88 = sphi 0, %s74
      %s94 = sphi 0, %s96
      %s97 = sphi 0, %s94
      %s98 = sphi 0, %s97
      %s114 = sphi 0, %s98
    $region4: #{gated_conv1d.1} parent=1 // loop_header_branch
      %19 = sbr.rel (%p17) target = $region8
    $region5: #{gated_conv1d.1} parent=1 // loop_body
      %s21 = ssub.s32 %s16, 1
      %s22 = ssub.s32 %s16, 2
      %s23 = sadd.s32 %s16, 1
      %s24 = ssub.s32 %s16, %s23
      %p25 = scmp.eq.s32.totalorder %s24, 0
      %s27 = sadd.s32 %s26, 1
      %s28 = scalar_select %p25, %s26, %s27
      %p31 = pneg %p25
      %p32 = scmp.eq.s32.totalorder %s16, 1
      %p33 = por %p31, %p32
      %p34 = scmp.ne.s32.totalorder %s26, %s29
      %p35 = scmp.eq.s32.totalorder %s16, 0
      %p36 = por %p34, %p35
      %p37 = scmp.ne.s32.totalorder %s26, %s29
      %p38 = scmp.eq.s32.totalorder %s21, 1
      %p39 = por %p37, %p38
      %p40 = scmp.ne.s32.totalorder %s29, %s30
      %p41 = scmp.eq.s32.totalorder %s21, 0
      %p42 = por %p40, %p41
      %p43 = scmp.ne.s32.totalorder %s29, %s30
      %p44 = scmp.eq.s32.totalorder %s22, 1
      %p45 = por %p43, %p44
      %p47 = scmp.ne.s32.totalorder %s30, %s46
      %p48 = scmp.eq.s32.totalorder %s22, 0
      %p49 = por %p47, %p48
      %s51 = sadd.s32 %s50, 1
      %p54 = scmp.eq.s32.totalorder %s16, 1
      %p55 = scmp.ne.s32.totalorder %s50, %s52
      %p56 = scmp.eq.s32.totalorder %s16, 0
      %p57 = por %p55, %p56
      %p58 = scmp.ne.s32.totalorder %s50, %s52
      %p59 = scmp.eq.s32.totalorder %s21, 1
      %p60 = por %p58, %p59
      %p61 = scmp.ne.s32.totalorder %s52, %s53
      %p62 = scmp.eq.s32.totalorder %s21, 0
      %p63 = por %p61, %p62
      %p64 = scmp.ne.s32.totalorder %s52, %s53
      %p65 = scmp.eq.s32.totalorder %s22, 1
      %p66 = por %p64, %p65
      %p68 = scmp.ne.s32.totalorder %s53, %s67
      %p69 = scmp.eq.s32.totalorder %s22, 0
      %p70 = por %p68, %p69
      %s72 = sadd.s32 %s71, 1
      %p75 = scmp.eq.s32.totalorder %s16, 1
      %p76 = scmp.ne.s32.totalorder %s71, %s73
      %p77 = scmp.eq.s32.totalorder %s16, 0
      %p78 = por %p76, %p77
      %p79 = scmp.ne.s32.totalorder %s71, %s73
      %p80 = scmp.eq.s32.totalorder %s21, 1
      %p81 = por %p79, %p80
      %p82 = scmp.ne.s32.totalorder %s73, %s74
      %p83 = scmp.eq.s32.totalorder %s21, 0
      %p84 = por %p82, %p83
      %p85 = scmp.ne.s32.totalorder %s73, %s74
      %p86 = scmp.eq.s32.totalorder %s22, 1
      %p87 = por %p85, %p86
      %p89 = scmp.ne.s32.totalorder %s74, %s88
      %p90 = scmp.eq.s32.totalorder %s22, 0
      %p91 = por %p89, %p90
      %s92 = ssub.s32 %s16, %s23
      %p93 = scmp.eq.s32.totalorder %s92, 0
      %s95 = sadd.s32 %s94, 1
      %s96 = scalar_select %p93, %s94, %s95
      %p99 = pneg %p93
      %p100 = scmp.eq.s32.totalorder %s16, 1
      %p101 = por %p99, %p100
      %p102 = scmp.ne.s32.totalorder %s94, %s97
      %p103 = scmp.eq.s32.totalorder %s16, 0
      %p104 = por %p102, %p103
      %p105 = scmp.ne.s32.totalorder %s94, %s97
      %p106 = scmp.eq.s32.totalorder %s21, 1
      %p107 = por %p105, %p106
      %p108 = scmp.ne.s32.totalorder %s97, %s98
      %p109 = scmp.eq.s32.totalorder %s21, 0
      %p110 = por %p108, %p109
      %p111 = scmp.ne.s32.totalorder %s97, %s98
      %p112 = scmp.eq.s32.totalorder %s22, 1
      %p113 = por %p111, %p112
      %p115 = scmp.ne.s32.totalorder %s98, %s114
      %p116 = scmp.eq.s32.totalorder %s22, 0
      %p117 = por %p115, %p116
      %p118 = scmp.le.s32.totalorder 1, %s16
      %p119 = scmp.lt.s32.totalorder %s16, 3
      %p120 = pnand %p118, %p119
      %p121 = pneg %p120
      // Predicated region
      $region9: #{gated_conv1d.1} parent=5 // pred_check
        _
      $region10: #{gated_conv1d.1} parent=5 // pred_check_branch
        %123 = sbr.rel (%p120) target = $region12
      $region11: #{gated_conv1d.1} parent=5 // pred_region
        %s124 = ssub.s32 %s16, 1
        // Predicated region
        $region13: #{gated_conv1d.1} parent=11 // pred_check
          %p125 = pneg %p63
        $region14: #{gated_conv1d.1} parent=11 // pred_check_branch
          %127 = sbr.rel (%p125) target = $region16
        $region15: #{gated_conv1d.1} parent=11 // pred_region
          %s129 = ssub.s32 384, 384
          %130 = vsyncadd [#allocation6], %s129
          %s131 = sshll.u32 [#allocation5], 4
          %s132 = int_to_ptr.vmem [resolvable:$true] %s131
          %137 = dma.hbm_to_vmem [thread:$0]  %s1, 384, %s132, [#allocation6], 128, 128, 8
        $region16: #{gated_conv1d.1} parent=11 // pred_fallthru
          _
        // Predicated region
        $region17: #{gated_conv1d.1} parent=11 // pred_check
          %p138 = pneg %p84
        $region18: #{gated_conv1d.1} parent=11 // pred_check_branch
          %140 = sbr.rel (%p138) target = $region20
        $region19: #{gated_conv1d.1} parent=11 // pred_region
          %s142 = ssub.s32 32, 32
          %143 = vsyncadd [#allocation6], %s142
          %s145 = sshll.u32 [#allocation7], 4
          %s146 = int_to_ptr.vmem [resolvable:$true] %s145
          %148 = dma.hbm_to_vmem [thread:$0]  %s2, 32, %s146, [#allocation6]
        $region20: #{gated_conv1d.1} parent=11 // pred_fallthru
          _
      $region12: #{gated_conv1d.1} parent=5 // pred_fallthru
        _
      %p149 = scmp.lt.s32.totalorder %s16, 2
      // Predicated region
      $region21: #{gated_conv1d.1} parent=5 // pred_check
        %p150 = pneg %p149
      $region22: #{gated_conv1d.1} parent=5 // pred_check_branch
        %152 = sbr.rel (%p150) target = $region24
      $region23: #{gated_conv1d.1} parent=5 // pred_region
        // Predicated region
        $region25: #{gated_conv1d.1} parent=23 // pred_check
          %p153 = pneg %p36
        $region26: #{gated_conv1d.1} parent=23 // pred_check_branch
          %155 = sbr.rel (%p153) target = $region28
        $region27: #{gated_conv1d.1} parent=23 // pred_region
          %s156 = sand.u32 %s26, 1
          %s157 = scalar_lea.sflag [#allocation3], %s156
          %s158 = sand.u32 %s26, 1
          %s159 = smul.addr %s158, 24
          %s160 = scalar_lea.vmem [#allocation2], %s159
          %s162 = ssub.s32 384, 384
          %163 = vsyncadd %s157, %s162
          %s164 = smul.addr %s16, 3
          %s165 = smul.addr %s164, 128
          %s166 = scalar_lea.hbm %s0, %s165
          %s167 = sshll.u32 %s160, 4
          %s168 = int_to_ptr.vmem [resolvable:$true] %s167
          %173 = dma.hbm_to_vmem [thread:$0]  %s166, 384, %s168, %s157, 128, 128, 8
        $region28: #{gated_conv1d.1} parent=23 // pred_fallthru
          _
      $region24: #{gated_conv1d.1} parent=5 // pred_fallthru
        _
      %p174 = scmp.le.s32.totalorder 1, %s16
      %p175 = scmp.lt.s32.totalorder %s16, 3
      %p176 = pnand %p174, %p175
      %p177 = pneg %p176
      // Predicated region
      $region29: #{gated_conv1d.1} parent=5 // pred_check
        _
      $region30: #{gated_conv1d.1} parent=5 // pred_check_branch
        %179 = sbr.rel (%p176) target = $region32
      $region31: #{gated_conv1d.1} parent=5 // pred_region
        %s180 = ssub.s32 %s16, 1
        %s181 = sand.u32 %s29, 1
        %s182 = scalar_lea.sflag [#allocation3], %s181
        %s183 = sand.u32 %s29, 1
        %s184 = smul.addr %s183, 24
        %s185 = scalar_lea.vmem [#allocation2], %s184
        // Predicated region
        $region33: #{gated_conv1d.1} parent=31 // pred_check
          %p186 = pneg %p42
        $region34: #{gated_conv1d.1} parent=31 // pred_check_branch
          %188 = sbr.rel (%p186) target = $region36
        $region35: #{gated_conv1d.1} parent=31 // pred_region
          %189 = dma.done %s182, 384
        $region36: #{gated_conv1d.1} parent=31 // pred_fallthru
          _
        // Predicated region
        $region37: #{gated_conv1d.1} parent=31 // pred_check
          %p190 = pneg %p63
        $region38: #{gated_conv1d.1} parent=31 // pred_check_branch
          %192 = sbr.rel (%p190) target = $region40
        $region39: #{gated_conv1d.1} parent=31 // pred_region
          %193 = dma.done [#allocation6], 384
        $region40: #{gated_conv1d.1} parent=31 // pred_fallthru
          _
        // Predicated region
        $region41: #{gated_conv1d.1} parent=31 // pred_check
          %p194 = pneg %p84
        $region42: #{gated_conv1d.1} parent=31 // pred_check_branch
          %196 = sbr.rel (%p194) target = $region44
        $region43: #{gated_conv1d.1} parent=31 // pred_region
          %197 = dma.done [#allocation6], 32
        $region44: #{gated_conv1d.1} parent=31 // pred_fallthru
          _
        %s198 = sand.u32 %s29, 1
        %s199 = scalar_lea.sflag [#allocation3], %s198
        %s200 = sand.u32 %s29, 1
        %s201 = smul.addr %s200, 24
        %s202 = scalar_lea.vmem [#allocation2], %s201
        %p203 = pneg %p42
        %p204 = pneg %p39
        %p205 = pneg %p63
        %p206 = pneg %p60
        %p207 = pneg %p84
        %p208 = pneg %p81
        %p209 = pneg %p110
        %p210 = pneg %p107
        %s211 = sand.u32 %s97, 1
        %s212 = scalar_lea.sflag [#allocation4], %s211
        %s213 = sand.u32 %s97, 1
        %s214 = smul.addr %s213, 16
        %s215 = scalar_lea.vmem [#allocation8], %s214
        %v216 = vld [vmem:[%s185] sm:$0xff]
        %v217 = vld [vmem:[%s185 + $0x8] sm:$0xff]
        %v218 = vld [vmem:[#allocation5] sm:$0xff]
        %v219 = vld [vmem:[%s185 + $0x1] sm:$0xff]
        %v220 = vld [vmem:[%s185 + $0x9] sm:$0xff]
        %s221 = scalar_lea.vmem [#allocation5], 8
        %v222 = vld [vmem:[%s221] sm:$0xff]
        %v224 = vcombine.high %v222, %v222
        %vm225 = vcmask 31744
        %v227 = vsel %vm225, %v219, 0
        %v230 = vsel %vm225, %v220, 0
        %vm232 = vcmask 1043456
        %v233 = vsel %vm232, %v222, 0
        %v235 = vsel %vm232, %v224, 0
        %237 = vmatprep.subr.mxu0 %v235
        %238 = vmatpush1.msra.mxu0 %v233
        %239 = vmatprep.subr.mxu0 0.0
        %240 = vmatpush1.msra.mxu0 0.0
        %241 = vmatprep.subr.mxu0 0.0
        %242 = vmatpush1.msra.mxu0 0.0
        %243 = vmatprep.subr.mxu0 0.0
        %244 = vmatpush1.msra.mxu0 0.0
        %245 = vmatprep.subr.mxu0 0.0
        %246 = vmatpush1.msra.mxu0 0.0
        %247 = vmatprep.subr.mxu0 0.0
        %248 = vmatpush1.msra.mxu0 0.0
        %249 = vmatprep.subr.mxu0 0.0
        %250 = vmatpush1.msra.mxu0 0.0
        %251 = vmatprep.subr.mxu0 0.0
        %252 = vmatpush1.msra.mxu0 0.0
        %253 = vmatprep.subr.mxu0 0.0
        %254 = vmatpush1.msra.mxu0 0.0
        %255 = vmatprep.subr.mxu0 0.0
        %256 = vmatpush1.msra.mxu0 0.0
        %257 = vmatprep.subr.mxu0 0.0
        %258 = vmatpush1.msra.mxu0 0.0
        %259 = vmatprep.subr.mxu0 0.0
        %260 = vmatpush1.msra.mxu0 0.0
        %261 = vmatprep.subr.mxu0 0.0
        %262 = vmatpush1.msra.mxu0 0.0
        %263 = vmatprep.subr.mxu0 0.0
        %264 = vmatpush1.msra.mxu0 0.0
        %265 = vmatprep.subr.mxu0 0.0
        %266 = vmatpush1.msra.mxu0 0.0
        %267 = vmatprep.subr.mxu0 0.0
        %268 = vmatpush1.msra.mxu0 0.0
        %269 = vmatprep.subr.mxu0 0.0
        %270 = vmatpush1.msra.mxu0 0.0
        %271 = vmatprep.subr.mxu0 0.0
        %272 = vmatpush1.msra.mxu0 0.0
        %273 = vmatprep.subr.mxu0 0.0
        %274 = vmatpush1.msra.mxu0 0.0
        %275 = vmatprep.subr.mxu0 0.0
        %276 = vmatpush1.msra.mxu0 0.0
        %277 = vmatprep.subr.mxu0 0.0
        %278 = vmatpush1.msra.mxu0 0.0
        %279 = vmatprep.subr.mxu0 0.0
        %280 = vmatpush1.msra.mxu0 0.0
        %281 = vmatprep.subr.mxu0 0.0
        %282 = vmatpush1.msra.mxu0 0.0
        %283 = vmatprep.subr.mxu0 0.0
        %284 = vmatpush1.msra.mxu0 0.0
        %285 = vmatprep.subr.mxu0 0.0
        %286 = vmatpush1.msra.mxu0 0.0
        %287 = vmatprep.subr.mxu0 0.0
        %288 = vmatpush1.msra.mxu0 0.0
        %289 = vmatprep.subr.mxu0 0.0
        %290 = vmatpush1.msra.mxu0 0.0
        %291 = vmatprep.subr.mxu0 0.0
        %292 = vmatpush1.msra.mxu0 0.0
        %293 = vmatprep.subr.mxu0 0.0
        %294 = vmatpush1.msra.mxu0 0.0
        %295 = vmatprep.subr.mxu0 0.0
        %296 = vmatpush1.msra.mxu0 0.0
        %297 = vmatprep.subr.mxu0 0.0
        %298 = vmatpush1.msra.mxu0 0.0
        %299 = vmatprep.subr.mxu0 0.0
        %300 = vmatpush1.msra.mxu0 0.0
        %301 = vmatprep.mubr.f32.mxu0 0.0
        %302 = vmatmul.mubr.f32.gmra.mrb[0].mxu0 %v227
        %v303 = vpop.f32.mrb[0].mxu0
        %v304 = vadd.f32 0.0, %v303
        %v305 = vpop.f32.mrb[0].mxu0
        %v306 = vadd.f32 0.0, %v305
        %307 = vmatprep.mubr.f32.mxu0 0.0
        %308 = vmatmul.mubr.f32.gmra.mrb[0].mxu0 %v230
        %v309 = vpop.f32.mrb[0].mxu0
        %v310 = vadd.f32 0.0, %v309
        %v311 = vpop.f32.mrb[0].mxu0
        %v312 = vadd.f32 0.0, %v311
        %313 = vdwg.mxu0
        %v315 = vcombine.high %v218, %v218
        %v317 = vsel %vm225, %v216, 0
        %v320 = vsel %vm225, %v217, 0
        %v322 = vsel %vm232, %v218, 0
        %v324 = vsel %vm232, %v315, 0
        %326 = vmatprep.subr.mxu0 %v324
        %327 = vmatpush1.msra.mxu0 %v322
        %328 = vmatprep.subr.mxu0 0.0
        %329 = vmatpush1.msra.mxu0 0.0
        %330 = vmatprep.subr.mxu0 0.0
        %331 = vmatpush1.msra.mxu0 0.0
        %332 = vmatprep.subr.mxu0 0.0
        %333 = vmatpush1.msra.mxu0 0.0
        %334 = vmatprep.subr.mxu0 0.0
        %335 = vmatpush1.msra.mxu0 0.0
        %336 = vmatprep.subr.mxu0 0.0
        %337 = vmatpush1.msra.mxu0 0.0
        %338 = vmatprep.subr.mxu0 0.0
        %339 = vmatpush1.msra.mxu0 0.0
        %340 = vmatprep.subr.mxu0 0.0
        %341 = vmatpush1.msra.mxu0 0.0
        %342 = vmatprep.subr.mxu0 0.0
        %343 = vmatpush1.msra.mxu0 0.0
        %344 = vmatprep.subr.mxu0 0.0
        %345 = vmatpush1.msra.mxu0 0.0
        %346 = vmatprep.subr.mxu0 0.0
        %347 = vmatpush1.msra.mxu0 0.0
        %348 = vmatprep.subr.mxu0 0.0
        %349 = vmatpush1.msra.mxu0 0.0
        %350 = vmatprep.subr.mxu0 0.0
        %351 = vmatpush1.msra.mxu0 0.0
        %352 = vmatprep.subr.mxu0 0.0
        %353 = vmatpush1.msra.mxu0 0.0
        %354 = vmatprep.subr.mxu0 0.0
        %355 = vmatpush1.msra.mxu0 0.0
        %356 = vmatprep.subr.mxu0 0.0
        %357 = vmatpush1.msra.mxu0 0.0
        %358 = vmatprep.subr.mxu0 0.0
        %359 = vmatpush1.msra.mxu0 0.0
        %360 = vmatprep.subr.mxu0 0.0
        %361 = vmatpush1.msra.mxu0 0.0
        %362 = vmatprep.subr.mxu0 0.0
        %363 = vmatpush1.msra.mxu0 0.0
        %364 = vmatprep.subr.mxu0 0.0
        %365 = vmatpush1.msra.mxu0 0.0
        %366 = vmatprep.subr.mxu0 0.0
        %367 = vmatpush1.msra.mxu0 0.0
        %368 = vmatprep.subr.mxu0 0.0
        %369 = vmatpush1.msra.mxu0 0.0
        %370 = vmatprep.subr.mxu0 0.0
        %371 = vmatpush1.msra.mxu0 0.0
        %372 = vmatprep.subr.mxu0 0.0
        %373 = vmatpush1.msra.mxu0 0.0
        %374 = vmatprep.subr.mxu0 0.0
        %375 = vmatpush1.msra.mxu0 0.0
        %376 = vmatprep.subr.mxu0 0.0
        %377 = vmatpush1.msra.mxu0 0.0
        %378 = vmatprep.subr.mxu0 0.0
        %379 = vmatpush1.msra.mxu0 0.0
        %380 = vmatprep.subr.mxu0 0.0
        %381 = vmatpush1.msra.mxu0 0.0
        %382 = vmatprep.subr.mxu0 0.0
        %383 = vmatpush1.msra.mxu0 0.0
        %384 = vmatprep.subr.mxu0 0.0
        %385 = vmatpush1.msra.mxu0 0.0
        %386 = vmatprep.subr.mxu0 0.0
        %387 = vmatpush1.msra.mxu0 0.0
        %388 = vmatprep.subr.mxu0 0.0
        %389 = vmatpush1.msra.mxu0 0.0
        %390 = vmatprep.mubr.f32.mxu0 0.0
        %391 = vmatmul.mubr.f32.gmra.mrb[0].mxu0 %v317
        %v392 = vpop.f32.mrb[0].mxu0
        %v393 = vadd.f32 %v304, %v392
        %v394 = vpop.f32.mrb[0].mxu0
        %v395 = vadd.f32 %v306, %v394
        %396 = vmatprep.mubr.f32.mxu0 0.0
        %397 = vmatmul.mubr.f32.gmra.mrb[0].mxu0 %v320
        %v398 = vpop.f32.mrb[0].mxu0
        %v399 = vadd.f32 %v310, %v398
        %v400 = vpop.f32.mrb[0].mxu0
        %v401 = vadd.f32 %v312, %v400
        %402 = vdwg.mxu0
        %v403 = vld [vmem:[%s185 + $0x2] sm:$0xff]
        %v404 = vld [vmem:[%s185 + $0xa] sm:$0xff]
        %s405 = scalar_lea.vmem [#allocation5], 16
        %v406 = vld [vmem:[%s405] sm:$0xff]
        %v408 = vcombine.high %v406, %v406
        %v410 = vsel %vm225, %v403, 0
        %v413 = vsel %vm225, %v404, 0
        %v415 = vsel %vm232, %v406, 0
        %v417 = vsel %vm232, %v408, 0
        %419 = vmatprep.subr.mxu0 %v417
        %420 = vmatpush1.msra.mxu0 %v415
        %421 = vmatprep.subr.mxu0 0.0
        %422 = vmatpush1.msra.mxu0 0.0
        %423 = vmatprep.subr.mxu0 0.0
        %424 = vmatpush1.msra.mxu0 0.0
        %425 = vmatprep.subr.mxu0 0.0
        %426 = vmatpush1.msra.mxu0 0.0
        %427 = vmatprep.subr.mxu0 0.0
        %428 = vmatpush1.msra.mxu0 0.0
        %429 = vmatprep.subr.mxu0 0.0
        %430 = vmatpush1.msra.mxu0 0.0
        %431 = vmatprep.subr.mxu0 0.0
        %432 = vmatpush1.msra.mxu0 0.0
        %433 = vmatprep.subr.mxu0 0.0
        %434 = vmatpush1.msra.mxu0 0.0
        %435 = vmatprep.subr.mxu0 0.0
        %436 = vmatpush1.msra.mxu0 0.0
        %437 = vmatprep.subr.mxu0 0.0
        %438 = vmatpush1.msra.mxu0 0.0
        %439 = vmatprep.subr.mxu0 0.0
        %440 = vmatpush1.msra.mxu0 0.0
        %441 = vmatprep.subr.mxu0 0.0
        %442 = vmatpush1.msra.mxu0 0.0
        %443 = vmatprep.subr.mxu0 0.0
        %444 = vmatpush1.msra.mxu0 0.0
        %445 = vmatprep.subr.mxu0 0.0
        %446 = vmatpush1.msra.mxu0 0.0
        %447 = vmatprep.subr.mxu0 0.0
        %448 = vmatpush1.msra.mxu0 0.0
        %449 = vmatprep.subr.mxu0 0.0
        %450 = vmatpush1.msra.mxu0 0.0
        %451 = vmatprep.subr.mxu0 0.0
        %452 = vmatpush1.msra.mxu0 0.0
        %453 = vmatprep.subr.mxu0 0.0
        %454 = vmatpush1.msra.mxu0 0.0
        %455 = vmatprep.subr.mxu0 0.0
        %456 = vmatpush1.msra.mxu0 0.0
        %457 = vmatprep.subr.mxu0 0.0
        %458 = vmatpush1.msra.mxu0 0.0
        %459 = vmatprep.subr.mxu0 0.0
        %460 = vmatpush1.msra.mxu0 0.0
        %461 = vmatprep.subr.mxu0 0.0
        %462 = vmatpush1.msra.mxu0 0.0
        %463 = vmatprep.subr.mxu0 0.0
        %464 = vmatpush1.msra.mxu0 0.0
        %465 = vmatprep.subr.mxu0 0.0
        %466 = vmatpush1.msra.mxu0 0.0
        %467 = vmatprep.subr.mxu0 0.0
        %468 = vmatpush1.msra.mxu0 0.0
        %469 = vmatprep.subr.mxu0 0.0
        %470 = vmatpush1.msra.mxu0 0.0
        %471 = vmatprep.subr.mxu0 0.0
        %472 = vmatpush1.msra.mxu0 0.0
        %473 = vmatprep.subr.mxu0 0.0
        %474 = vmatpush1.msra.mxu0 0.0
        %475 = vmatprep.subr.mxu0 0.0
        %476 = vmatpush1.msra.mxu0 0.0
        %477 = vmatprep.subr.mxu0 0.0
        %478 = vmatpush1.msra.mxu0 0.0
        %479 = vmatprep.subr.mxu0 0.0
        %480 = vmatpush1.msra.mxu0 0.0
        %481 = vmatprep.subr.mxu0 0.0
        %482 = vmatpush1.msra.mxu0 0.0
        %483 = vmatprep.mubr.f32.mxu0 0.0
        %484 = vmatmul.mubr.f32.gmra.mrb[0].mxu0 %v410
        %v485 = vpop.f32.mrb[0].mxu0
        %v486 = vadd.f32 0.0, %v485
        %v487 = vpop.f32.mrb[0].mxu0
        %v488 = vadd.f32 0.0, %v487
        %489 = vmatprep.mubr.f32.mxu0 0.0
        %490 = vmatmul.mubr.f32.gmra.mrb[0].mxu0 %v413
        %v491 = vpop.f32.mrb[0].mxu0
        %v492 = vadd.f32 0.0, %v491
        %v493 = vpop.f32.mrb[0].mxu0
        %v494 = vadd.f32 0.0, %v493
        %495 = vdwg.mxu0
        %v496 = vadd.f32 %v393, %v486
        %v497 = vadd.f32 %v395, %v488
        %v498 = vadd.f32 %v399, %v492
        %v499 = vadd.f32 %v401, %v494
        %v500 = vld [vmem:[#allocation7] sm:$0x3]
        %v502 = vlaneseq
        %v503 = vshrl.u32 %v502, 7
        %v504 = vsub.s32 0, %v503
        %v505 = vrot.slane %v500, %v504
        %v506 = vlaneseq
        %v507 = vshrl.u32 %v506, 7
        %v508 = vsub.s32 1, %v507
        %v509 = vrot.slane %v500, %v508
        %v512 = vadd.f32 %v496, %v505
        %v513 = vadd.f32 %v497, %v509
        %v514 = vadd.f32 %v498, %v505
        %v515 = vadd.f32 %v499, %v509
        %v516 = vxor.u32 %v512, 2147483648
        %v517 = vxor.u32 %v514, 2147483648
        %v518 = vmul.f32 %v516, 1.442695
        %v519 = vpow.pop %v518
        %v520 = vmul.f32 %v517, 1.442695
        %v521 = vpow.pop %v520
        %v522 = vadd.f32 %v519, 1.0
        %v523 = vadd.f32 %v521, 1.0
        %v524 = vrcp.pop %v522
        %v525 = vmul.f32 1.0, %v524
        %v526 = vrcp.pop %v523
        %v527 = vmul.f32 1.0, %v526
        %v528 = vmul.f32 %v513, %v525
        %v529 = vmul.f32 %v515, %v527
        %530 = vst [vmem:[%s215] sm:$0xff] %v528
        %531 = vst [vmem:[%s215 + $0x8] sm:$0xff] %v529
        %s532 = sand.u32 %s97, 1
        %s533 = scalar_lea.sflag [#allocation4], %s532
        %s534 = sand.u32 %s97, 1
        %s535 = smul.addr %s534, 16
        %s536 = scalar_lea.vmem [#allocation8], %s535
        // Predicated region
        $region45: #{gated_conv1d.1} parent=31 // pred_check
          %p537 = pneg %p107
        $region46: #{gated_conv1d.1} parent=31 // pred_check_branch
          %539 = sbr.rel (%p537) target = $region48
        $region47: #{gated_conv1d.1} parent=31 // pred_region
          %s541 = ssub.s32 256, 256
          %542 = vsyncadd %s533, %s541
          %s543 = smul.addr %s21, 2
          %s544 = smul.addr %s543, 128
          %s545 = scalar_lea.hbm %s3, %s544
          %s546 = sshll.u32 %s536, 4
          %s547 = int_to_ptr.vmem [resolvable:$true] %s546
          %552 = dma.vmem_to_hbm [thread:$0]  %s547, 256, %s545, %s533, 128, 128, 8
        $region48: #{gated_conv1d.1} parent=31 // pred_fallthru
          _
      $region32: #{gated_conv1d.1} parent=5 // pred_fallthru
        _
      %p553 = scmp.le.s32.totalorder 2, %s16
      // Predicated region
      $region49: #{gated_conv1d.1} parent=5 // pred_check
        %p554 = pneg %p553
      $region50: #{gated_conv1d.1} parent=5 // pred_check_branch
        %556 = sbr.rel (%p554) target = $region52
      $region51: #{gated_conv1d.1} parent=5 // pred_region
        %s557 = ssub.s32 %s16, 2
        // Predicated region
        $region53: #{gated_conv1d.1} parent=51 // pred_check
          %p558 = pneg %p113
        $region54: #{gated_conv1d.1} parent=51 // pred_check_branch
          %560 = sbr.rel (%p558) target = $region56
        $region55: #{gated_conv1d.1} parent=51 // pred_region
          %s561 = sand.u32 %s98, 1
          %s562 = scalar_lea.sflag [#allocation4], %s561
          %s563 = sand.u32 %s98, 1
          %s564 = smul.addr %s563, 16
          %s565 = scalar_lea.vmem [#allocation8], %s564
          %566 = dma.done %s562, 256
        $region56: #{gated_conv1d.1} parent=51 // pred_fallthru
          _
      $region52: #{gated_conv1d.1} parent=5 // pred_fallthru
        _
    $region6: #{gated_conv1d.1} parent=1 // loop_footer
      %s20 = sadd.s32 1, %s16
    $region7: #{gated_conv1d.1} parent=1 // loop_footer_branch
      %15 = sbr.rel target = $region3
    $region8: #{gated_conv1d.1} parent=1 // loop_exit
      _
    %567 = vsyncpa [#allocation3], 1
    %s568 = scalar_lea.sflag [#allocation3], 1
    %569 = vsyncpa %s568, 1
    %570 = vsyncpa [#allocation6], 1
    %571 = vsyncpa [#allocation4], 1
    %s572 = scalar_lea.sflag [#allocation4], 1
    %573 = vsyncpa %s572, 1

</llo_original>
